<compile_context>
chip_gen: v6e
topology: v6e:2x2x1
jax: 0.10.0
libtpu: 0.0.40
codegen_flags: <defaults>
</compile_context>

<pallas_src>
import jax
import jax.numpy as jnp
import numpy as np
from jax.experimental import pallas as pl
from jax.experimental.pallas import tpu as pltpu


def _round_up(x: int, m: int) -> int:
    return ((x + m - 1) // m) * m


def monolingual_retrieval_scores(w_sem, w_lex, head_bias,
                                 q_emb, chunk_embs, chunk_mask, lex_scores, *,
                                 relevant_threshold, relevant_default_lowerbound,
                                 doc_tile=None):
    """Per-document relevance scores + keep mask (tensor part of forward()).

    Args:
      w_sem, w_lex, head_bias: linear_sigmoid_stack parameters (python floats,
        static per deployment -> baked into the kernel as constants).
      q_emb      : (D,)      L2-normalized query embedding.
      chunk_embs : (N, K, D) L2-normalized chunk embeddings per candidate doc
                   in the encoder's native doc-major layout.  Pass bf16 so it
                   streams straight into the kernel with zero wrapper copies.
      chunk_mask : (N, K)    1.0 = valid chunk, 0.0 = padding.  Module
                   invariant (ChunkSeperator emits >=1 chunk per document):
                   every document has at least one valid chunk; otherwise its
                   score degenerates to sigmoid(w_sem * -1e30 + ...) instead of
                   being excluded.
      lex_scores : (N,)      lexical (BM25-like) score per candidate doc.
    Returns (scores[N] f32, keep[N] bool).
    """
    N, K, D = chunk_embs.shape
    if N == 0:                          # mirrors `output.numel() == 0` in forward()
        return jnp.zeros((0,), jnp.float32), jnp.zeros((0,), bool)

    w_sem = float(w_sem)
    w_lex = float(w_lex)
    head_bias = float(head_bias)

    # ---- doc tile selection ---------------------------------------------------
    # Docs live on the SUBLANE axis, so the tile granularity is 16 (bf16 sublane
    # packing), not 128.  Target >=2 grid steps whenever possible so
    # dimension_semantics=("parallel",) can shard across both v7x TensorCores,
    # and cap at 1024 docs/tile (~2 MiB bf16 per buffer, ~4-5 MiB double-
    # buffered) which stays far below v7x's 32 MiB scoped VMEM while amortizing
    # the ~0.35us/step pipeline overhead on v5e/v6e.  (On 128 MiB v5e/v6e this
    # cap could be raised to 2048 for very large N.)
    if doc_tile is None:
        target = min(1024, max(16, _round_up(pl.cdiv(N, 2), 16)))
        # Prefer a nearby tile that divides N exactly so the big chunk stream
        # never needs a wrapper-side padding copy at the ragged boundary.
        doc_tile = target
        lo = max(16, (target // 32) * 16)          # don't shrink below ~target/2
        cand = target
        while cand >= lo:
            if N % cand == 0:
                doc_tile = cand
                break
            cand -= 16
    doc_tile = max(16, _round_up(int(doc_tile), 16))
    num_tiles = pl.cdiv(N, doc_tile)
    n_pad = num_tiles * doc_tile

    # ---- inputs (only tiny per-doc arrays are materialized; the chunk tensor
    # ---- is consumed as-is via a free row-major reshape) ----------------------
    chunks2d = chunk_embs.astype(jnp.bfloat16).reshape(N, K * D)      # (N, K*D)
    if n_pad != N:
        # Ragged tail: pad so every block's DMA stays fully in-bounds.  Only hit
        # when no multiple-of-16 tile divides N; costs one bf16 copy.
        chunks2d = jnp.pad(chunks2d, ((0, n_pad - N), (0, 0)))

    # Block-diagonal replication of q:  qmat[k*D + d, j] = q[d] if k == j else 0,
    # so  chunks2d @ qmat  yields the (doc, chunk) cosine-similarity matrix
    # directly (K*D*K*2 bytes = 16 KiB, stays resident in VMEM).
    qmat = jnp.kron(jnp.eye(K, dtype=jnp.float32),
                    q_emb.astype(jnp.float32).reshape(D, 1)).astype(jnp.bfloat16)

    # Additive chunk-validity bias: 0 = valid, -1e30 = padding chunk / padded doc
    # row.  Padded doc rows never reach the final max/threshold (sliced off
    # below), so even +/-inf or NaN on those rows is harmless.
    bias = jnp.where(chunk_mask > 0.5, 0.0, -1e30).astype(jnp.float32)  # (N, K)
    bias = jnp.pad(bias, ((0, n_pad - N), (0, 0)), constant_values=-1e30)

    # Fold the lexical branch of linear_sigmoid_stack outside the kernel.
    lexb = (lex_scores.astype(jnp.float32) * w_lex + head_bias).reshape(N, 1)
    lexb = jnp.pad(lexb, ((0, n_pad - N), (0, 0)))

    def _score_kernel(qmat_ref, chunks_ref, bias_ref, lexb_ref, score_ref):
        # MXU: bf16 x bf16 -> f32 accumulate; no tile-sized f32 intermediates.
        sim = jnp.dot(chunks_ref[...], qmat_ref[...],
                      preferred_element_type=jnp.float32)       # (doc_tile, K)
        sim = sim + bias_ref[...]                                # chunk validity
        semantic = jnp.max(sim, axis=1, keepdims=True)           # (doc_tile, 1)
        score_ref[...] = jax.nn.sigmoid(semantic * w_sem + lexb_ref[...])

    # VMEM: double-buffered bf16 chunk tiles dominate; everything else is tiny.
    chunk_tile_bytes = doc_tile * K * D * 2
    side_bytes = doc_tile * (K + 2) * 4 + K * D * K * 2
    est = 2 * (chunk_tile_bytes + side_bytes) + doc_tile * (K + 2) * 4 + (1 << 20)
    vmem_limit = int(min(32 << 20, max(8 << 20, est)))           # v7x-safe cap

    scores_pad = pl.pallas_call(
        _score_kernel,
        out_shape=jax.ShapeDtypeStruct((n_pad, 1), jnp.float32),
        grid=(num_tiles,),
        in_specs=[
            pl.BlockSpec((K * D, K), lambda i: (0, 0)),           # qmat (resident)
            pl.BlockSpec((doc_tile, K * D), lambda i: (i, 0)),    # chunk embeddings
            pl.BlockSpec((doc_tile, K), lambda i: (i, 0)),        # validity bias
            pl.BlockSpec((doc_tile, 1), lambda i: (i, 0)),        # w_lex*lex + b
        ],
        # Per-doc output is 1 lane wide; N floats total -- negligible vs input.
        out_specs=pl.BlockSpec((doc_tile, 1), lambda i: (i, 0)),
        compiler_params=pltpu.CompilerParams(
            dimension_semantics=("parallel",),
            vmem_limit_bytes=vmem_limit),
        # TODO(synk): on v7x, sweep pipeline_mode=pl.Buffered(3) on the chunk
        # BlockSpec (per-tile DMA ~ step overhead there); keep default elsewhere.
    )(qmat, chunks2d, bias, lexb)

    scores = scores_pad[:N, 0]

    # Thresholding from forward(): ~10 elementwise ops on an (N,) vector, done
    # in plain jnp instead of a second pallas_call (saves a launch + HBM hop).
    max_rel = jnp.max(scores)
    lower = jnp.maximum(max_rel - relevant_threshold, relevant_default_lowerbound)
    keep = (scores >= lower) & (scores <= max_rel)   # upper clause kept for fidelity
    return scores, keep


if __name__ == "__main__":
    # Shapes consistent with the module: original_query_doc_count=30 +
    # extended_query_doc_count=30 -> ~48 unique candidate docs after combining,
    # K=8 chunks/doc, D=128 embedding dim.
    N, K, D = 48, 8, 128

    key = jax.random.PRNGKey(0)
    k1, k2, k3, k4 = jax.random.split(key, 4)

    # Deterministic synthetic "sentence transformer" embeddings.  The encoder is
    # modeled as emitting bf16 in its native (N, K, D) layout so the kernel
    # streams it with zero wrapper-side layout work.
    q = jax.random.normal(k1, (D,), dtype=jnp.float32)
    q = q / jnp.linalg.norm(q)

    chunks = jax.random.normal(k2, (N, K, D), dtype=jnp.float32)
    chunks = chunks / jnp.linalg.norm(chunks, axis=-1, keepdims=True)
    chunks_bf16 = chunks.astype(jnp.bfloat16)          # "encoder output"

    # Each document has between 1 and K valid chunks (module invariant: >=1).
    n_valid = jax.random.randint(k3, (N,), 1, K + 1)
    chunk_mask = (jnp.arange(K)[None, :] < n_valid[:, None]).astype(jnp.float32)

    # Lexical (BM25-like) similarity score per candidate document.
    lex = jax.random.uniform(k4, (N,), dtype=jnp.float32, minval=0.0, maxval=1.0)

    # Deterministic linear_sigmoid_stack params + module defaults.
    w_sem, w_lex, b = 2.5, 1.5, -0.5
    rel_thr, rel_lb = 0.1, 0.25

    scores, keep = monolingual_retrieval_scores(
        w_sem, w_lex, b, q, chunks_bf16, chunk_mask, lex,
        relevant_threshold=rel_thr, relevant_default_lowerbound=rel_lb)
    scores = jax.block_until_ready(scores)
    keep = jax.block_until_ready(keep)

    # Pure-JAX reference with the same bf16 quantization of q and the chunk
    # embeddings (f32 accumulation, like the kernel's MXU path).
    c_f32 = chunks_bf16.astype(jnp.float32)
    q_f32 = q.astype(jnp.bfloat16).astype(jnp.float32)
    sim_ref = jnp.einsum("nkd,d->nk", c_f32, q_f32)
    sim_ref = jnp.where(chunk_mask > 0.5, sim_ref, -1e30)
    semantic_ref = sim_ref.max(axis=-1)
    scores_ref = jax.nn.sigmoid(semantic_ref * w_sem + lex * w_lex + b)
    max_ref = scores_ref.max()
    lower_ref = jnp.maximum(max_ref - rel_thr, rel_lb)
    keep_ref = (scores_ref >= lower_ref) & (scores_ref <= max_ref)

    assert np.allclose(np.asarray(scores), np.asarray(scores_ref),
                       atol=2e-4, rtol=2e-4), "kernel scores mismatch vs reference"
    # Compare the keep mask only where scores are not within numeric noise of
    # the threshold.
    margin = np.abs(np.asarray(scores_ref) - float(lower_ref))
    stable = margin > 1e-4
    assert np.array_equal(np.asarray(keep)[stable], np.asarray(keep_ref)[stable]), \
        "kernel keep-mask mismatch vs reference"

    # Glue equivalent of torch.nonzero(mask).flatten().tolist() + id/score lists.
    # TODO(synk): real document ids come from the string-side lexical phase.
    idx = np.nonzero(np.asarray(keep))[0].tolist()
    document_id = [f"doc_{i}" for i in idx]
    document_relevant_score = [float(scores[i]) for i in idx]
    assert len(document_id) >= 1 and len(document_id) == len(document_relevant_score)

    print("KERNEL_OK")
</pallas_src>

<mosaic_0001>
module attributes {stable_mosaic.version = 11 : i64} {
  func.func @_score_kernel(%arg0: i32, %arg1: memref<1024x8xbf16, #tpu.memory_space<vmem>>, %arg2: memref<16x1024xbf16, #tpu.memory_space<vmem>>, %arg3: memref<16x8xf32, #tpu.memory_space<vmem>>, %arg4: memref<16x1xf32, #tpu.memory_space<vmem>>, %arg5: memref<16x1xf32, #tpu.memory_space<vmem>>) attributes {dimension_semantics = [#tpu.dimension_semantics<parallel>], iteration_bounds = array<i64: 3>, scalar_prefetch = 0 : i64, scratch_operands = 0 : i64, tpu.core_type = #tpu.core_type<tc>, window_params = [{pipeline_mode = #tpu.pipeline_mode<synchronous>, transform_indices = @transform_0, window_bounds = array<i64: 1024, 8>}, {transform_indices = @transform_1, window_bounds = array<i64: 16, 1024>}, {transform_indices = @transform_2, window_bounds = array<i64: 16, 8>}, {transform_indices = @transform_3, window_bounds = array<i64: 16, 1>}, {transform_indices = @transform_4, window_bounds = array<i64: 16, 1>}]} {
    %c0 = arith.constant 0 : index
    %c0_0 = arith.constant 0 : index
    %0 = vector.load %arg2[%c0, %c0_0] : memref<16x1024xbf16, #tpu.memory_space<vmem>>, vector<16x1024xbf16>
    %c0_1 = arith.constant 0 : index
    %c0_2 = arith.constant 0 : index
    %1 = vector.load %arg1[%c0_1, %c0_2] : memref<1024x8xbf16, #tpu.memory_space<vmem>>, vector<1024x8xbf16>
    %cst = arith.constant dense<0.000000e+00> : vector<16x8xf32>
    %2 = tpu.matmul %0, %1, %cst {dimension_numbers = #tpu.dot_dimension_numbers<[1], [0], [0], [1], [0, 0, 1, 1], [], []>} : vector<16x1024xbf16>, vector<1024x8xbf16>, vector<16x8xf32> -> vector<16x8xf32>
    %c0_3 = arith.constant 0 : index
    %c0_4 = arith.constant 0 : index
    %3 = vector.load %arg3[%c0_3, %c0_4] : memref<16x8xf32, #tpu.memory_space<vmem>>, vector<16x8xf32>
    %4 = arith.addf %2, %3 : vector<16x8xf32>
    %cst_5 = arith.constant dense<0xFF800000> : vector<16xf32>
    %5 = vector.multi_reduction <maximumf>, %4, %cst_5 [1] : vector<16x8xf32> to vector<16xf32>
    %6 = vector.shape_cast %5 : vector<16xf32> to vector<16x1xf32>
    %cst_6 = arith.constant 2.500000e+00 : f32
    %7 = vector.broadcast %cst_6 : f32 to vector<16x1xf32>
    %8 = arith.mulf %6, %7 : vector<16x1xf32>
    %c0_7 = arith.constant 0 : index
    %c0_8 = arith.constant 0 : index
    %9 = vector.load %arg4[%c0_7, %c0_8] : memref<16x1xf32, #tpu.memory_space<vmem>>, vector<16x1xf32>
    %10 = arith.addf %8, %9 : vector<16x1xf32>
    %11 = arith.negf %10 : vector<16x1xf32>
    %12 = math.exp %11 : vector<16x1xf32>
    %cst_9 = arith.constant 1.000000e+00 : f32
    %13 = vector.broadcast %cst_9 : f32 to vector<16x1xf32>
    %14 = arith.addf %13, %12 : vector<16x1xf32>
    %15 = arith.divf %13, %14 : vector<16x1xf32>
    %c0_10 = arith.constant 0 : index
    %c0_11 = arith.constant 0 : index
    %16 = vector.load %arg5[%c0_10, %c0_11] : memref<16x1xf32, #tpu.memory_space<vmem>>, vector<16x1xf32>
    tpu.vector_store %arg5[%c0_10, %c0_11], %15 {strides = array<i32>} : memref<16x1xf32, #tpu.memory_space<vmem>>, vector<16x1xf32>,
    return
  }
  func.func @transform_0(%arg0: i32) -> (i32, i32) {
    %c0_i32 = arith.constant 0 : i32
    %c0_i32_0 = arith.constant 0 : i32
    %c0_i32_1 = arith.constant 0 : i32
    return %c0_i32, %c0_i32_0 : i32, i32
  }
  func.func @transform_1(%arg0: i32) -> (i32, i32) {
    %c0_i32 = arith.constant 0 : i32
    %c0_i32_0 = arith.constant 0 : i32
    return %arg0, %c0_i32 : i32, i32
  }
  func.func @transform_2(%arg0: i32) -> (i32, i32) {
    %c0_i32 = arith.constant 0 : i32
    %c0_i32_0 = arith.constant 0 : i32
    return %arg0, %c0_i32 : i32, i32
  }
  func.func @transform_3(%arg0: i32) -> (i32, i32) {
    %c0_i32 = arith.constant 0 : i32
    %c0_i32_0 = arith.constant 0 : i32
    return %arg0, %c0_i32 : i32, i32
  }
  func.func @transform_4(%arg0: i32) -> (i32, i32) {
    %c0_i32 = arith.constant 0 : i32
    %c0_i32_0 = arith.constant 0 : i32
    return %arg0, %c0_i32 : i32, i32
  }
}

</mosaic_0001>

<llo_original>
// kernel: tpu_custom_call.1
$region0: #{tpu_custom_call.1}
  #allocation0 [shape = 'u32[]', space=smem, size = 0x4, offset = 0x4, fixed_abs, tag = 'smem constant byte address 0x4 - core index']
  #allocation1 [shape = 'u32[144,128]{1,0:T(1,128)}', space=vmem, size = 0x12000, scoped, tag = 'internal scratch']
  %s0 = inlined_call_operand.vmem [shape: bf16[1024,8], index: 0, kind: input, shape index: {}]
  %s1 = inlined_call_operand.vmem [shape: bf16[48,1024], index: 1, kind: input, shape index: {}]
  %s2 = inlined_call_operand.vmem [shape: f32[48,8], index: 2, kind: input, shape index: {}]
  %s3 = inlined_call_operand.vmem [shape: f32[48,1], index: 3, kind: input, shape index: {}]
  %s4 = inlined_call_operand.vmem [shape: f32[48,1], index: 4, kind: output, shape index: {}]
  %s5 = sld [smem:[#allocation0]]
  $region49: #{tpu_custom_call.1} parent=0
    _
  %s7 = ssub.s32 1, %s5
  %s8 = scalar_select 0, %s7, %s5
  loop: start=0, step=1, limit=5
  $region2: #{tpu_custom_call.1} parent=0 // loop_pre_header
    _
  $region3: #{tpu_custom_call.1} parent=0 // loop_header
    %s10 = sphi 0, %s14
    %p11 = scmp.ge.s32.totalorder %s10, 5
    %s18 = sphi 0, %s18
    %s20 = sphi 0, %s18
    %s21 = sphi 0, %s20
    %s35 = sphi 0, %s21
    %s41 = sphi 0, %s43
    %s44 = sphi 0, %s41
    %s45 = sphi 0, %s44
    %s61 = sphi 0, %s45
    %s67 = sphi 0, %s69
    %s70 = sphi 0, %s67
    %s71 = sphi 0, %s70
    %s87 = sphi 0, %s71
    %s93 = sphi 0, %s95
    %s96 = sphi 0, %s93
    %s97 = sphi 0, %s96
    %s113 = sphi 0, %s97
    %s119 = sphi 0, %s121
    %s122 = sphi 0, %s119
    %s123 = sphi 0, %s122
    %s139 = sphi 0, %s123
  $region4: #{tpu_custom_call.1} parent=0 // loop_header_branch
    %13 = sbr.rel (%p11) target = $region8
  $region5: #{tpu_custom_call.1} parent=0 // loop_body
    %s15 = ssub.s32 %s10, 1
    %s16 = ssub.s32 %s10, 2
    %s17 = sadd.s32 %s10, 1
    %s19 = sadd.s32 %s18, 1
    %p22 = scmp.eq.s32.totalorder %s10, 2
    %p23 = scmp.ne.s32.totalorder %s18, %s20
    %p24 = scmp.eq.s32.totalorder %s10, 0
    %p25 = por %p23, %p24
    %p26 = scmp.ne.s32.totalorder %s18, %s20
    %p27 = scmp.eq.s32.totalorder %s15, 2
    %p28 = por %p26, %p27
    %p29 = scmp.ne.s32.totalorder %s20, %s21
    %p30 = scmp.eq.s32.totalorder %s15, 0
    %p31 = por %p29, %p30
    %p32 = scmp.ne.s32.totalorder %s20, %s21
    %p33 = scmp.eq.s32.totalorder %s16, 2
    %p34 = por %p32, %p33
    %p36 = scmp.ne.s32.totalorder %s21, %s35
    %p37 = scmp.eq.s32.totalorder %s16, 0
    %p38 = por %p36, %p37
    %s39 = ssub.s32 %s10, %s17
    %p40 = scmp.eq.s32.totalorder %s39, 0
    %s42 = sadd.s32 %s41, 1
    %s43 = scalar_select %p40, %s41, %s42
    %p46 = pneg %p40
    %p47 = scmp.eq.s32.totalorder %s10, 2
    %p48 = por %p46, %p47
    %p49 = scmp.ne.s32.totalorder %s41, %s44
    %p50 = scmp.eq.s32.totalorder %s10, 0
    %p51 = por %p49, %p50
    %p52 = scmp.ne.s32.totalorder %s41, %s44
    %p53 = scmp.eq.s32.totalorder %s15, 2
    %p54 = por %p52, %p53
    %p55 = scmp.ne.s32.totalorder %s44, %s45
    %p56 = scmp.eq.s32.totalorder %s15, 0
    %p57 = por %p55, %p56
    %p58 = scmp.ne.s32.totalorder %s44, %s45
    %p59 = scmp.eq.s32.totalorder %s16, 2
    %p60 = por %p58, %p59
    %p62 = scmp.ne.s32.totalorder %s45, %s61
    %p63 = scmp.eq.s32.totalorder %s16, 0
    %p64 = por %p62, %p63
    %s65 = ssub.s32 %s10, %s17
    %p66 = scmp.eq.s32.totalorder %s65, 0
    %s68 = sadd.s32 %s67, 1
    %s69 = scalar_select %p66, %s67, %s68
    %p72 = pneg %p66
    %p73 = scmp.eq.s32.totalorder %s10, 2
    %p74 = por %p72, %p73
    %p75 = scmp.ne.s32.totalorder %s67, %s70
    %p76 = scmp.eq.s32.totalorder %s10, 0
    %p77 = por %p75, %p76
    %p78 = scmp.ne.s32.totalorder %s67, %s70
    %p79 = scmp.eq.s32.totalorder %s15, 2
    %p80 = por %p78, %p79
    %p81 = scmp.ne.s32.totalorder %s70, %s71
    %p82 = scmp.eq.s32.totalorder %s15, 0
    %p83 = por %p81, %p82
    %p84 = scmp.ne.s32.totalorder %s70, %s71
    %p85 = scmp.eq.s32.totalorder %s16, 2
    %p86 = por %p84, %p85
    %p88 = scmp.ne.s32.totalorder %s71, %s87
    %p89 = scmp.eq.s32.totalorder %s16, 0
    %p90 = por %p88, %p89
    %s91 = ssub.s32 %s10, %s17
    %p92 = scmp.eq.s32.totalorder %s91, 0
    %s94 = sadd.s32 %s93, 1
    %s95 = scalar_select %p92, %s93, %s94
    %p98 = pneg %p92
    %p99 = scmp.eq.s32.totalorder %s10, 2
    %p100 = por %p98, %p99
    %p101 = scmp.ne.s32.totalorder %s93, %s96
    %p102 = scmp.eq.s32.totalorder %s10, 0
    %p103 = por %p101, %p102
    %p104 = scmp.ne.s32.totalorder %s93, %s96
    %p105 = scmp.eq.s32.totalorder %s15, 2
    %p106 = por %p104, %p105
    %p107 = scmp.ne.s32.totalorder %s96, %s97
    %p108 = scmp.eq.s32.totalorder %s15, 0
    %p109 = por %p107, %p108
    %p110 = scmp.ne.s32.totalorder %s96, %s97
    %p111 = scmp.eq.s32.totalorder %s16, 2
    %p112 = por %p110, %p111
    %p114 = scmp.ne.s32.totalorder %s97, %s113
    %p115 = scmp.eq.s32.totalorder %s16, 0
    %p116 = por %p114, %p115
    %s117 = ssub.s32 %s10, %s17
    %p118 = scmp.eq.s32.totalorder %s117, 0
    %s120 = sadd.s32 %s119, 1
    %s121 = scalar_select %p118, %s119, %s120
    %p124 = pneg %p118
    %p125 = scmp.eq.s32.totalorder %s10, 2
    %p126 = por %p124, %p125
    %p127 = scmp.ne.s32.totalorder %s119, %s122
    %p128 = scmp.eq.s32.totalorder %s10, 0
    %p129 = por %p127, %p128
    %p130 = scmp.ne.s32.totalorder %s119, %s122
    %p131 = scmp.eq.s32.totalorder %s15, 2
    %p132 = por %p130, %p131
    %p133 = scmp.ne.s32.totalorder %s122, %s123
    %p134 = scmp.eq.s32.totalorder %s15, 0
    %p135 = por %p133, %p134
    %p136 = scmp.ne.s32.totalorder %s122, %s123
    %p137 = scmp.eq.s32.totalorder %s16, 2
    %p138 = por %p136, %p137
    %p140 = scmp.ne.s32.totalorder %s123, %s139
    %p141 = scmp.eq.s32.totalorder %s16, 0
    %p142 = por %p140, %p141
    %p143 = scmp.le.s32.totalorder 1, %s10
    %p144 = scmp.lt.s32.totalorder %s10, 4
    %p145 = pnand %p143, %p144
    %p146 = pneg %p145
    // Predicated region
    $region9: #{tpu_custom_call.1} parent=5 // pred_check
      _
    $region10: #{tpu_custom_call.1} parent=5 // pred_check_branch
      %148 = sbr.rel (%p145) target = $region12
    $region11: #{tpu_custom_call.1} parent=5 // pred_region
      %s149 = ssub.s32 %s10, 1
      // Predicated region
      $region13: #{tpu_custom_call.1} parent=11 // pred_check
        %p150 = pneg %p31
      $region14: #{tpu_custom_call.1} parent=11 // pred_check_branch
        %152 = sbr.rel (%p150) target = $region16
      $region15: #{tpu_custom_call.1} parent=11 // pred_region
        _
      $region16: #{tpu_custom_call.1} parent=11 // pred_fallthru
        _
    $region12: #{tpu_custom_call.1} parent=5 // pred_fallthru
      _
    %p153 = scmp.lt.s32.totalorder %s10, 3
    // Predicated region
    $region17: #{tpu_custom_call.1} parent=5 // pred_check
      %p154 = pneg %p153
    $region18: #{tpu_custom_call.1} parent=5 // pred_check_branch
      %156 = sbr.rel (%p154) target = $region20
    $region19: #{tpu_custom_call.1} parent=5 // pred_region
      // Predicated region
      $region21: #{tpu_custom_call.1} parent=19 // pred_check
        %p157 = pneg %p51
      $region22: #{tpu_custom_call.1} parent=19 // pred_check_branch
        %159 = sbr.rel (%p157) target = $region24
      $region23: #{tpu_custom_call.1} parent=19 // pred_region
        %s160 = smul.u32 2, %s10
        %p161 = scmp.lt.s32.totalorder %s160, 5
        %s162 = scalar_select %p161, %s160, 5
        %s163 = smul.addr %s162, 8
        %s164 = smul.addr %s163, 4
        %s165 = scalar_lea.vmem %s1, %s164
        %s166 = smul.u32 2, %s10
      $region24: #{tpu_custom_call.1} parent=19 // pred_fallthru
        _
      // Predicated region
      $region25: #{tpu_custom_call.1} parent=19 // pred_check
        %p167 = pneg %p77
      $region26: #{tpu_custom_call.1} parent=19 // pred_check_branch
        %169 = sbr.rel (%p167) target = $region28
      $region27: #{tpu_custom_call.1} parent=19 // pred_region
        %s170 = smul.u32 2, %s10
        %p171 = scmp.lt.s32.totalorder %s170, 5
        %s172 = scalar_select %p171, %s170, 5
        %s173 = smul.addr %s172, 8
        %s174 = scalar_lea.vmem %s2, %s173
        %s175 = smul.u32 2, %s10
      $region28: #{tpu_custom_call.1} parent=19 // pred_fallthru
        _
      // Predicated region
      $region29: #{tpu_custom_call.1} parent=19 // pred_check
        %p176 = pneg %p103
      $region30: #{tpu_custom_call.1} parent=19 // pred_check_branch
        %178 = sbr.rel (%p176) target = $region32
      $region31: #{tpu_custom_call.1} parent=19 // pred_region
        %s179 = smul.u32 2, %s10
        %p180 = scmp.lt.s32.totalorder %s179, 5
        %s181 = scalar_select %p180, %s179, 5
        %s182 = smul.addr %s181, 8
        %s183 = scalar_lea.vmem %s3, %s182
        %s184 = smul.u32 2, %s10
      $region32: #{tpu_custom_call.1} parent=19 // pred_fallthru
        _
    $region20: #{tpu_custom_call.1} parent=5 // pred_fallthru
      _
    %p185 = scmp.le.s32.totalorder 1, %s10
    %p186 = scmp.lt.s32.totalorder %s10, 4
    %p187 = pnand %p185, %p186
    %p188 = pneg %p187
    // Predicated region
    $region33: #{tpu_custom_call.1} parent=5 // pred_check
      _
    $region34: #{tpu_custom_call.1} parent=5 // pred_check_branch
      %190 = sbr.rel (%p187) target = $region36
    $region35: #{tpu_custom_call.1} parent=5 // pred_region
      %s191 = ssub.s32 %s10, 1
      %p192 = pneg %p31
      %p193 = pneg %p28
      %s194 = smul.u32 2, %s15
      %p195 = scmp.lt.s32.totalorder %s194, 5
      %s196 = scalar_select %p195, %s194, 5
      %s197 = smul.addr %s196, 8
      %s198 = smul.addr %s197, 4
      %s199 = scalar_lea.vmem %s1, %s198
      %p200 = pneg %p57
      %p201 = pneg %p54
      %s202 = smul.u32 2, %s15
      %p203 = scmp.lt.s32.totalorder %s202, 5
      %s204 = scalar_select %p203, %s202, 5
      %s205 = smul.addr %s204, 8
      %s206 = scalar_lea.vmem %s2, %s205
      %p207 = pneg %p83
      %p208 = pneg %p80
      %s209 = smul.u32 2, %s15
      %p210 = scmp.lt.s32.totalorder %s209, 5
      %s211 = scalar_select %p210, %s209, 5
      %s212 = smul.addr %s211, 8
      %s213 = scalar_lea.vmem %s3, %s212
      %p214 = pneg %p109
      %p215 = pneg %p106
      %p216 = pneg %p135
      %p217 = pneg %p132
      %s218 = smul.u32 2, %s15
      %p219 = scmp.lt.s32.totalorder %s218, 5
      %s220 = scalar_select %p219, %s218, 5
      %s221 = smul.addr %s220, 8
      %s222 = scalar_lea.vmem %s4, %s221
      %s223 = smul.u32 2, %s15
      %p224 = scmp.lt.s32.totalorder %s223, 5
      %s225 = scalar_select %p224, %s223, 5
      %s226 = smul.addr %s225, 8
      %s227 = smul.addr %s226, 4
      %s228 = scalar_lea.vmem %s1, %s227
      %s229 = smul.u32 2, %s15
      %s230 = smul.u32 2, %s15
      %p231 = scmp.lt.s32.totalorder %s230, 5
      %s232 = scalar_select %p231, %s230, 5
      %s233 = smul.addr %s232, 8
      %s234 = scalar_lea.vmem %s2, %s233
      %s235 = smul.u32 2, %s15
      %s236 = smul.u32 2, %s15
      %p237 = scmp.lt.s32.totalorder %s236, 5
      %s238 = scalar_select %p237, %s236, 5
      %s239 = smul.addr %s238, 8
      %s240 = scalar_lea.vmem %s3, %s239
      %s241 = smul.u32 2, %s15
      %s242 = smul.u32 2, %s15
      %p243 = scmp.lt.s32.totalorder %s242, 5
      %s244 = scalar_select %p243, %s242, 5
      %s245 = smul.addr %s244, 8
      %s246 = scalar_lea.vmem %s4, %s245
      %s247 = smul.u32 2, %s15
      %v249 = vld [vmem:[%s228] sm:$0xff]
      %v250 = vld [vmem:[%s228 + $0x8] sm:$0xff]
      %v251 = vld [vmem:[%s228 + $0x10] sm:$0xff]
      %v252 = vld [vmem:[%s228 + $0x18] sm:$0xff]
      %v253 = vld [vmem:[%s228 + $0x20] sm:$0xff]
      %v254 = vld [vmem:[%s228 + $0x28] sm:$0xff]
      %v255 = vld [vmem:[%s228 + $0x30] sm:$0xff]
      %v256 = vld [vmem:[%s228 + $0x38] sm:$0xff]
      %v257 = vld [vmem:[%s0] sm:$0xf]
      %v258 = vld [vmem:[%s0 + $0x4] sm:$0xf]
      %v259 = vld [vmem:[%s0 + $0x8] sm:$0xf]
      %v260 = vld [vmem:[%s0 + $0xc] sm:$0xf]
      %v261 = vld [vmem:[%s0 + $0x10] sm:$0xf]
      %v262 = vld [vmem:[%s0 + $0x14] sm:$0xf]
      %v263 = vld [vmem:[%s0 + $0x18] sm:$0xf]
      %v264 = vld [vmem:[%s0 + $0x1c] sm:$0xf]
      %v265 = vld [vmem:[%s0 + $0x20] sm:$0xf]
      %v266 = vld [vmem:[%s0 + $0x24] sm:$0xf]
      %v267 = vld [vmem:[%s0 + $0x28] sm:$0xf]
      %v268 = vld [vmem:[%s0 + $0x2c] sm:$0xf]
      %v269 = vld [vmem:[%s0 + $0x30] sm:$0xf]
      %v270 = vld [vmem:[%s0 + $0x34] sm:$0xf]
      %v271 = vld [vmem:[%s0 + $0x38] sm:$0xf]
      %v272 = vld [vmem:[%s0 + $0x3c] sm:$0xf]
      %v273 = vld [vmem:[%s0 + $0x40] sm:$0xf]
      %v274 = vld [vmem:[%s0 + $0x44] sm:$0xf]
      %v275 = vld [vmem:[%s0 + $0x48] sm:$0xf]
      %v276 = vld [vmem:[%s0 + $0x4c] sm:$0xf]
      %v277 = vld [vmem:[%s0 + $0x50] sm:$0xf]
      %v278 = vld [vmem:[%s0 + $0x54] sm:$0xf]
      %v279 = vld [vmem:[%s0 + $0x58] sm:$0xf]
      %v280 = vld [vmem:[%s0 + $0x5c] sm:$0xf]
      %v281 = vld [vmem:[%s0 + $0x60] sm:$0xf]
      %v282 = vld [vmem:[%s0 + $0x64] sm:$0xf]
      %v283 = vld [vmem:[%s0 + $0x68] sm:$0xf]
      %v284 = vld [vmem:[%s0 + $0x6c] sm:$0xf]
      %v285 = vld [vmem:[%s0 + $0x70] sm:$0xf]
      %v286 = vld [vmem:[%s0 + $0x74] sm:$0xf]
      %v287 = vld [vmem:[%s0 + $0x78] sm:$0xf]
      %v288 = vld [vmem:[%s0 + $0x7c] sm:$0xf]
      %v289 = vld [vmem:[%s0 + $0x80] sm:$0xf]
      %v290 = vld [vmem:[%s0 + $0x84] sm:$0xf]
      %v291 = vld [vmem:[%s0 + $0x88] sm:$0xf]
      %v292 = vld [vmem:[%s0 + $0x8c] sm:$0xf]
      %v293 = vld [vmem:[%s0 + $0x90] sm:$0xf]
      %v294 = vld [vmem:[%s0 + $0x94] sm:$0xf]
      %v295 = vld [vmem:[%s0 + $0x98] sm:$0xf]
      %v296 = vld [vmem:[%s0 + $0x9c] sm:$0xf]
      %v297 = vld [vmem:[%s0 + $0xa0] sm:$0xf]
      %v298 = vld [vmem:[%s0 + $0xa4] sm:$0xf]
      %v299 = vld [vmem:[%s0 + $0xa8] sm:$0xf]
      %v300 = vld [vmem:[%s0 + $0xac] sm:$0xf]
      %v301 = vld [vmem:[%s0 + $0xb0] sm:$0xf]
      %v302 = vld [vmem:[%s0 + $0xb4] sm:$0xf]
      %v303 = vld [vmem:[%s0 + $0xb8] sm:$0xf]
      %v304 = vld [vmem:[%s0 + $0xbc] sm:$0xf]
      %v305 = vld [vmem:[%s0 + $0xc0] sm:$0xf]
      %v306 = vld [vmem:[%s0 + $0xc4] sm:$0xf]
      %v307 = vld [vmem:[%s0 + $0xc8] sm:$0xf]
      %v308 = vld [vmem:[%s0 + $0xcc] sm:$0xf]
      %v309 = vld [vmem:[%s0 + $0xd0] sm:$0xf]
      %v310 = vld [vmem:[%s0 + $0xd4] sm:$0xf]
      %v311 = vld [vmem:[%s0 + $0xd8] sm:$0xf]
      %v312 = vld [vmem:[%s0 + $0xdc] sm:$0xf]
      %v313 = vld [vmem:[%s0 + $0xe0] sm:$0xf]
      %v314 = vld [vmem:[%s0 + $0xe4] sm:$0xf]
      %v315 = vld [vmem:[%s0 + $0xe8] sm:$0xf]
      %v316 = vld [vmem:[%s0 + $0xec] sm:$0xf]
      %v317 = vld [vmem:[%s0 + $0xf0] sm:$0xf]
      %v318 = vld [vmem:[%s0 + $0xf4] sm:$0xf]
      %v319 = vld [vmem:[%s0 + $0xf8] sm:$0xf]
      %v320 = vld [vmem:[%s0 + $0xfc] sm:$0xf]
      %v321 = vld [vmem:[%s0 + $0x100] sm:$0xf]
      %v322 = vld [vmem:[%s0 + $0x104] sm:$0xf]
      %v323 = vld [vmem:[%s0 + $0x108] sm:$0xf]
      %v324 = vld [vmem:[%s0 + $0x10c] sm:$0xf]
      %v325 = vld [vmem:[%s0 + $0x110] sm:$0xf]
      %v326 = vld [vmem:[%s0 + $0x114] sm:$0xf]
      %v327 = vld [vmem:[%s0 + $0x118] sm:$0xf]
      %v328 = vld [vmem:[%s0 + $0x11c] sm:$0xf]
      %v329 = vld [vmem:[%s0 + $0x120] sm:$0xf]
      %v330 = vld [vmem:[%s0 + $0x124] sm:$0xf]
      %v331 = vld [vmem:[%s0 + $0x128] sm:$0xf]
      %v332 = vld [vmem:[%s0 + $0x12c] sm:$0xf]
      %v333 = vld [vmem:[%s0 + $0x130] sm:$0xf]
      %v334 = vld [vmem:[%s0 + $0x134] sm:$0xf]
      %v335 = vld [vmem:[%s0 + $0x138] sm:$0xf]
      %v336 = vld [vmem:[%s0 + $0x13c] sm:$0xf]
      %v337 = vld [vmem:[%s0 + $0x140] sm:$0xf]
      %v338 = vld [vmem:[%s0 + $0x144] sm:$0xf]
      %v339 = vld [vmem:[%s0 + $0x148] sm:$0xf]
      %v340 = vld [vmem:[%s0 + $0x14c] sm:$0xf]
      %v341 = vld [vmem:[%s0 + $0x150] sm:$0xf]
      %v342 = vld [vmem:[%s0 + $0x154] sm:$0xf]
      %v343 = vld [vmem:[%s0 + $0x158] sm:$0xf]
      %v344 = vld [vmem:[%s0 + $0x15c] sm:$0xf]
      %v345 = vld [vmem:[%s0 + $0x160] sm:$0xf]
      %v346 = vld [vmem:[%s0 + $0x164] sm:$0xf]
      %v347 = vld [vmem:[%s0 + $0x168] sm:$0xf]
      %v348 = vld [vmem:[%s0 + $0x16c] sm:$0xf]
      %v349 = vld [vmem:[%s0 + $0x170] sm:$0xf]
      %v350 = vld [vmem:[%s0 + $0x174] sm:$0xf]
      %v351 = vld [vmem:[%s0 + $0x178] sm:$0xf]
      %v352 = vld [vmem:[%s0 + $0x17c] sm:$0xf]
      %v353 = vld [vmem:[%s0 + $0x180] sm:$0xf]
      %v354 = vld [vmem:[%s0 + $0x184] sm:$0xf]
      %v355 = vld [vmem:[%s0 + $0x188] sm:$0xf]
      %v356 = vld [vmem:[%s0 + $0x18c] sm:$0xf]
      %v357 = vld [vmem:[%s0 + $0x190] sm:$0xf]
      %v358 = vld [vmem:[%s0 + $0x194] sm:$0xf]
      %v359 = vld [vmem:[%s0 + $0x198] sm:$0xf]
      %v360 = vld [vmem:[%s0 + $0x19c] sm:$0xf]
      %v361 = vld [vmem:[%s0 + $0x1a0] sm:$0xf]
      %v362 = vld [vmem:[%s0 + $0x1a4] sm:$0xf]
      %v363 = vld [vmem:[%s0 + $0x1a8] sm:$0xf]
      %v364 = vld [vmem:[%s0 + $0x1ac] sm:$0xf]
      %v365 = vld [vmem:[%s0 + $0x1b0] sm:$0xf]
      %v366 = vld [vmem:[%s0 + $0x1b4] sm:$0xf]
      %v367 = vld [vmem:[%s0 + $0x1b8] sm:$0xf]
      %v368 = vld [vmem:[%s0 + $0x1bc] sm:$0xf]
      %v369 = vld [vmem:[%s0 + $0x1c0] sm:$0xf]
      %v370 = vld [vmem:[%s0 + $0x1c4] sm:$0xf]
      %v371 = vld [vmem:[%s0 + $0x1c8] sm:$0xf]
      %v372 = vld [vmem:[%s0 + $0x1cc] sm:$0xf]
      %v373 = vld [vmem:[%s0 + $0x1d0] sm:$0xf]
      %v374 = vld [vmem:[%s0 + $0x1d4] sm:$0xf]
      %v375 = vld [vmem:[%s0 + $0x1d8] sm:$0xf]
      %v376 = vld [vmem:[%s0 + $0x1dc] sm:$0xf]
      %v377 = vld [vmem:[%s0 + $0x1e0] sm:$0xf]
      %v378 = vld [vmem:[%s0 + $0x1e4] sm:$0xf]
      %v379 = vld [vmem:[%s0 + $0x1e8] sm:$0xf]
      %v380 = vld [vmem:[%s0 + $0x1ec] sm:$0xf]
      %v381 = vld [vmem:[%s0 + $0x1f0] sm:$0xf]
      %v382 = vld [vmem:[%s0 + $0x1f4] sm:$0xf]
      %v383 = vld [vmem:[%s0 + $0x1f8] sm:$0xf]
      %v384 = vld [vmem:[%s0 + $0x1fc] sm:$0xf]
      %v385 = vld [vmem:[%s234] sm:$0xff]
      %v386 = vld [vmem:[%s234 + $0x8] sm:$0xff]
      %v395 = vunpack.c.l.b16 %v249
      %v396 = vunpack.c.h.b16 %v249
      %v397 = vunpack.c.l.b16 %v250
      %v398 = vunpack.c.h.b16 %v250
      %v399 = vunpack.c.l.b16 %v251
      %v400 = vunpack.c.h.b16 %v251
      %v401 = vunpack.c.l.b16 %v252
      %v402 = vunpack.c.h.b16 %v252
      %v403 = vunpack.c.l.b16 %v253
      %v404 = vunpack.c.h.b16 %v253
      %v405 = vunpack.c.l.b16 %v254
      %v406 = vunpack.c.h.b16 %v254
      %v407 = vunpack.c.l.b16 %v255
      %v408 = vunpack.c.h.b16 %v255
      %v409 = vunpack.c.l.b16 %v256
      %v410 = vunpack.c.h.b16 %v256
      %v411 = vpack.c.b16 %v403, %v395
      %v412 = vpack.c.b16 %v404, %v396
      %v413 = vpack.c.b16 %v405, %v397
      %v414 = vpack.c.b16 %v406, %v398
      %v415 = vpack.c.b16 %v407, %v399
      %v416 = vpack.c.b16 %v408, %v400
      %v417 = vpack.c.b16 %v409, %v401
      %v418 = vpack.c.b16 %v410, %v402
      %v555 = vunpack.c.l.b16 %v257
      %v556 = vunpack.c.l.b16 %v258
      %v557 = vunpack.c.l.b16 %v259
      %v558 = vunpack.c.l.b16 %v260
      %v559 = vunpack.c.l.b16 %v261
      %v560 = vunpack.c.l.b16 %v262
      %v561 = vunpack.c.l.b16 %v263
      %v562 = vunpack.c.l.b16 %v264
      %v563 = vunpack.c.l.b16 %v265
      %v564 = vunpack.c.l.b16 %v266
      %v565 = vunpack.c.l.b16 %v267
      %v566 = vunpack.c.l.b16 %v268
      %v567 = vunpack.c.l.b16 %v269
      %v568 = vunpack.c.l.b16 %v270
      %v569 = vunpack.c.l.b16 %v271
      %v570 = vunpack.c.l.b16 %v272
      %v571 = vunpack.c.l.b16 %v273
      %v572 = vunpack.c.l.b16 %v274
      %v573 = vunpack.c.l.b16 %v275
      %v574 = vunpack.c.l.b16 %v276
      %v575 = vunpack.c.l.b16 %v277
      %v576 = vunpack.c.l.b16 %v278
      %v577 = vunpack.c.l.b16 %v279
      %v578 = vunpack.c.l.b16 %v280
      %v579 = vunpack.c.l.b16 %v281
      %v580 = vunpack.c.l.b16 %v282
      %v581 = vunpack.c.l.b16 %v283
      %v582 = vunpack.c.l.b16 %v284
      %v583 = vunpack.c.l.b16 %v285
      %v584 = vunpack.c.l.b16 %v286
      %v585 = vunpack.c.l.b16 %v287
      %v586 = vunpack.c.l.b16 %v288
      %v587 = vunpack.c.l.b16 %v289
      %v588 = vunpack.c.l.b16 %v290
      %v589 = vunpack.c.l.b16 %v291
      %v590 = vunpack.c.l.b16 %v292
      %v591 = vunpack.c.l.b16 %v293
      %v592 = vunpack.c.l.b16 %v294
      %v593 = vunpack.c.l.b16 %v295
      %v594 = vunpack.c.l.b16 %v296
      %v595 = vunpack.c.l.b16 %v297
      %v596 = vunpack.c.l.b16 %v298
      %v597 = vunpack.c.l.b16 %v299
      %v598 = vunpack.c.l.b16 %v300
      %v599 = vunpack.c.l.b16 %v301
      %v600 = vunpack.c.l.b16 %v302
      %v601 = vunpack.c.l.b16 %v303
      %v602 = vunpack.c.l.b16 %v304
      %v603 = vunpack.c.l.b16 %v305
      %v604 = vunpack.c.l.b16 %v306
      %v605 = vunpack.c.l.b16 %v307
      %v606 = vunpack.c.l.b16 %v308
      %v607 = vunpack.c.l.b16 %v309
      %v608 = vunpack.c.l.b16 %v310
      %v609 = vunpack.c.l.b16 %v311
      %v610 = vunpack.c.l.b16 %v312
      %v611 = vunpack.c.l.b16 %v313
      %v612 = vunpack.c.l.b16 %v314
      %v613 = vunpack.c.l.b16 %v315
      %v614 = vunpack.c.l.b16 %v316
      %v615 = vunpack.c.l.b16 %v317
      %v616 = vunpack.c.l.b16 %v318
      %v617 = vunpack.c.l.b16 %v319
      %v618 = vunpack.c.l.b16 %v320
      %v619 = vunpack.c.l.b16 %v321
      %v620 = vunpack.c.l.b16 %v322
      %v621 = vunpack.c.l.b16 %v323
      %v622 = vunpack.c.l.b16 %v324
      %v623 = vunpack.c.l.b16 %v325
      %v624 = vunpack.c.l.b16 %v326
      %v625 = vunpack.c.l.b16 %v327
      %v626 = vunpack.c.l.b16 %v328
      %v627 = vunpack.c.l.b16 %v329
      %v628 = vunpack.c.l.b16 %v330
      %v629 = vunpack.c.l.b16 %v331
      %v630 = vunpack.c.l.b16 %v332
      %v631 = vunpack.c.l.b16 %v333
      %v632 = vunpack.c.l.b16 %v334
      %v633 = vunpack.c.l.b16 %v335
      %v634 = vunpack.c.l.b16 %v336
      %v635 = vunpack.c.l.b16 %v337
      %v636 = vunpack.c.l.b16 %v338
      %v637 = vunpack.c.l.b16 %v339
      %v638 = vunpack.c.l.b16 %v340
      %v639 = vunpack.c.l.b16 %v341
      %v640 = vunpack.c.l.b16 %v342
      %v641 = vunpack.c.l.b16 %v343
      %v642 = vunpack.c.l.b16 %v344
      %v643 = vunpack.c.l.b16 %v345
      %v644 = vunpack.c.l.b16 %v346
      %v645 = vunpack.c.l.b16 %v347
      %v646 = vunpack.c.l.b16 %v348
      %v647 = vunpack.c.l.b16 %v349
      %v648 = vunpack.c.l.b16 %v350
      %v649 = vunpack.c.l.b16 %v351
      %v650 = vunpack.c.l.b16 %v352
      %v651 = vunpack.c.l.b16 %v353
      %v652 = vunpack.c.l.b16 %v354
      %v653 = vunpack.c.l.b16 %v355
      %v654 = vunpack.c.l.b16 %v356
      %v655 = vunpack.c.l.b16 %v357
      %v656 = vunpack.c.l.b16 %v358
      %v657 = vunpack.c.l.b16 %v359
      %v658 = vunpack.c.l.b16 %v360
      %v659 = vunpack.c.l.b16 %v361
      %v660 = vunpack.c.l.b16 %v362
      %v661 = vunpack.c.l.b16 %v363
      %v662 = vunpack.c.l.b16 %v364
      %v663 = vunpack.c.l.b16 %v365
      %v664 = vunpack.c.l.b16 %v366
      %v665 = vunpack.c.l.b16 %v367
      %v666 = vunpack.c.l.b16 %v368
      %v667 = vunpack.c.l.b16 %v369
      %v668 = vunpack.c.l.b16 %v370
      %v669 = vunpack.c.l.b16 %v371
      %v670 = vunpack.c.l.b16 %v372
      %v671 = vunpack.c.l.b16 %v373
      %v672 = vunpack.c.l.b16 %v374
      %v673 = vunpack.c.l.b16 %v375
      %v674 = vunpack.c.l.b16 %v376
      %v675 = vunpack.c.l.b16 %v377
      %v676 = vunpack.c.l.b16 %v378
      %v677 = vunpack.c.l.b16 %v379
      %v678 = vunpack.c.l.b16 %v380
      %v679 = vunpack.c.l.b16 %v381
      %v680 = vunpack.c.l.b16 %v382
      %v681 = vunpack.c.l.b16 %v383
      %v682 = vunpack.c.l.b16 %v384
      %v683 = vpack.c.b16 %v556, %v555
      %v684 = vpack.c.b16 %v558, %v557
      %v685 = vpack.c.b16 %v560, %v559
      %v686 = vpack.c.b16 %v562, %v561
      %v687 = vpack.c.b16 %v564, %v563
      %v688 = vpack.c.b16 %v566, %v565
      %v689 = vpack.c.b16 %v568, %v567
      %v690 = vpack.c.b16 %v570, %v569
      %v691 = vpack.c.b16 %v572, %v571
      %v692 = vpack.c.b16 %v574, %v573
      %v693 = vpack.c.b16 %v576, %v575
      %v694 = vpack.c.b16 %v578, %v577
      %v695 = vpack.c.b16 %v580, %v579
      %v696 = vpack.c.b16 %v582, %v581
      %v697 = vpack.c.b16 %v584, %v583
      %v698 = vpack.c.b16 %v586, %v585
      %v699 = vpack.c.b16 %v588, %v587
      %v700 = vpack.c.b16 %v590, %v589
      %v701 = vpack.c.b16 %v592, %v591
      %v702 = vpack.c.b16 %v594, %v593
      %v703 = vpack.c.b16 %v596, %v595
      %v704 = vpack.c.b16 %v598, %v597
      %v705 = vpack.c.b16 %v600, %v599
      %v706 = vpack.c.b16 %v602, %v601
      %v707 = vpack.c.b16 %v604, %v603
      %v708 = vpack.c.b16 %v606, %v605
      %v709 = vpack.c.b16 %v608, %v607
      %v710 = vpack.c.b16 %v610, %v609
      %v711 = vpack.c.b16 %v612, %v611
      %v712 = vpack.c.b16 %v614, %v613
      %v713 = vpack.c.b16 %v616, %v615
      %v714 = vpack.c.b16 %v618, %v617
      %v715 = vpack.c.b16 %v620, %v619
      %v716 = vpack.c.b16 %v622, %v621
      %v717 = vpack.c.b16 %v624, %v623
      %v718 = vpack.c.b16 %v626, %v625
      %v719 = vpack.c.b16 %v628, %v627
      %v720 = vpack.c.b16 %v630, %v629
      %v721 = vpack.c.b16 %v632, %v631
      %v722 = vpack.c.b16 %v634, %v633
      %v723 = vpack.c.b16 %v636, %v635
      %v724 = vpack.c.b16 %v638, %v637
      %v725 = vpack.c.b16 %v640, %v639
      %v726 = vpack.c.b16 %v642, %v641
      %v727 = vpack.c.b16 %v644, %v643
      %v728 = vpack.c.b16 %v646, %v645
      %v729 = vpack.c.b16 %v648, %v647
      %v730 = vpack.c.b16 %v650, %v649
      %v731 = vpack.c.b16 %v652, %v651
      %v732 = vpack.c.b16 %v654, %v653
      %v733 = vpack.c.b16 %v656, %v655
      %v734 = vpack.c.b16 %v658, %v657
      %v735 = vpack.c.b16 %v660, %v659
      %v736 = vpack.c.b16 %v662, %v661
      %v737 = vpack.c.b16 %v664, %v663
      %v738 = vpack.c.b16 %v666, %v665
      %v739 = vpack.c.b16 %v668, %v667
      %v740 = vpack.c.b16 %v670, %v669
      %v741 = vpack.c.b16 %v672, %v671
      %v742 = vpack.c.b16 %v674, %v673
      %v743 = vpack.c.b16 %v676, %v675
      %v744 = vpack.c.b16 %v678, %v677
      %v745 = vpack.c.b16 %v680, %v679
      %v746 = vpack.c.b16 %v682, %v681
      %811 = vmatprep.subr.bf16.mxu0 0
      %812 = vmatpush1.bf16.msra.mxu0 %v690
      %813 = vmatprep.subr.bf16.mxu0 0
      %814 = vmatpush1.bf16.msra.mxu0 %v689
      %815 = vmatprep.subr.bf16.mxu0 0
      %816 = vmatpush1.bf16.msra.mxu0 %v688
      %817 = vmatprep.subr.bf16.mxu0 0
      %818 = vmatpush1.bf16.msra.mxu0 %v687
      %819 = vmatprep.subr.bf16.mxu0 0
      %820 = vmatpush1.bf16.msra.mxu0 %v686
      %821 = vmatprep.subr.bf16.mxu0 0
      %822 = vmatpush1.bf16.msra.mxu0 %v685
      %823 = vmatprep.subr.bf16.mxu0 0
      %824 = vmatpush1.bf16.msra.mxu0 %v684
      %825 = vmatprep.subr.bf16.mxu0 0
      %826 = vmatpush1.bf16.msra.mxu0 %v683
      %827 = vmatprep.subr.bf16.mxu0 0
      %828 = vmatpush2.bf16.msra.mxu0 %v698
      %829 = vmatprep.subr.bf16.mxu0 0
      %830 = vmatpush2.bf16.msra.mxu0 %v697
      %831 = vmatprep.subr.bf16.mxu0 0
      %832 = vmatpush2.bf16.msra.mxu0 %v696
      %833 = vmatprep.subr.bf16.mxu0 0
      %834 = vmatpush2.bf16.msra.mxu0 %v695
      %835 = vmatprep.subr.bf16.mxu0 0
      %836 = vmatpush2.bf16.msra.mxu0 %v694
      %837 = vmatprep.subr.bf16.mxu0 0
      %838 = vmatpush2.bf16.msra.mxu0 %v693
      %839 = vmatprep.subr.bf16.mxu0 0
      %840 = vmatpush2.bf16.msra.mxu0 %v692
      %841 = vmatprep.subr.bf16.mxu0 0
      %842 = vmatpush2.bf16.msra.mxu0 %v691
      %843 = vmatprep.mubr.bf16.mxu0 %v412
      %844 = vmatmul.mubr.bf16.gmra.mxu0 %v411
      %v845 = vpop.f32.mrf.mxu0
      %v846 = vadd.f32 %v385, %v845
      %v847 = vpop.f32.mrf.mxu0
      %v848 = vpop.f32.mrf.mxu0
      %v849 = vadd.f32 %v386, %v848
      %v850 = vpop.f32.mrf.mxu0
      %851 = vdwg.mxu0
      %852 = vmatprep.subr.bf16.mxu0 0
      %853 = vmatpush1.bf16.msra.mxu0 %v706
      %854 = vmatprep.subr.bf16.mxu0 0
      %855 = vmatpush1.bf16.msra.mxu0 %v705
      %856 = vmatprep.subr.bf16.mxu0 0
      %857 = vmatpush1.bf16.msra.mxu0 %v704
      %858 = vmatprep.subr.bf16.mxu0 0
      %859 = vmatpush1.bf16.msra.mxu0 %v703
      %860 = vmatprep.subr.bf16.mxu0 0
      %861 = vmatpush1.bf16.msra.mxu0 %v702
      %862 = vmatprep.subr.bf16.mxu0 0
      %863 = vmatpush1.bf16.msra.mxu0 %v701
      %864 = vmatprep.subr.bf16.mxu0 0
      %865 = vmatpush1.bf16.msra.mxu0 %v700
      %866 = vmatprep.subr.bf16.mxu0 0
      %867 = vmatpush1.bf16.msra.mxu0 %v699
      %868 = vmatprep.subr.bf16.mxu0 0
      %869 = vmatpush2.bf16.msra.mxu0 %v714
      %870 = vmatprep.subr.bf16.mxu0 0
      %871 = vmatpush2.bf16.msra.mxu0 %v713
      %872 = vmatprep.subr.bf16.mxu0 0
      %873 = vmatpush2.bf16.msra.mxu0 %v712
      %874 = vmatprep.subr.bf16.mxu0 0
      %875 = vmatpush2.bf16.msra.mxu0 %v711
      %876 = vmatprep.subr.bf16.mxu0 0
      %877 = vmatpush2.bf16.msra.mxu0 %v710
      %878 = vmatprep.subr.bf16.mxu0 0
      %879 = vmatpush2.bf16.msra.mxu0 %v709
      %880 = vmatprep.subr.bf16.mxu0 0
      %881 = vmatpush2.bf16.msra.mxu0 %v708
      %882 = vmatprep.subr.bf16.mxu0 0
      %883 = vmatpush2.bf16.msra.mxu0 %v707
      %884 = vmatprep.mubr.bf16.mxu0 %v414
      %885 = vmatmul.mubr.bf16.gmra.mxu0 %v413
      %v886 = vpop.f32.mrf.mxu0
      %v887 = vadd.f32 %v846, %v886
      %v888 = vpop.f32.mrf.mxu0
      %v889 = vpop.f32.mrf.mxu0
      %v890 = vadd.f32 %v849, %v889
      %v891 = vpop.f32.mrf.mxu0
      %892 = vdwg.mxu0
      %893 = vmatprep.subr.bf16.mxu0 0
      %894 = vmatpush1.bf16.msra.mxu0 %v722
      %895 = vmatprep.subr.bf16.mxu0 0
      %896 = vmatpush1.bf16.msra.mxu0 %v721
      %897 = vmatprep.subr.bf16.mxu0 0
      %898 = vmatpush1.bf16.msra.mxu0 %v720
      %899 = vmatprep.subr.bf16.mxu0 0
      %900 = vmatpush1.bf16.msra.mxu0 %v719
      %901 = vmatprep.subr.bf16.mxu0 0
      %902 = vmatpush1.bf16.msra.mxu0 %v718
      %903 = vmatprep.subr.bf16.mxu0 0
      %904 = vmatpush1.bf16.msra.mxu0 %v717
      %905 = vmatprep.subr.bf16.mxu0 0
      %906 = vmatpush1.bf16.msra.mxu0 %v716
      %907 = vmatprep.subr.bf16.mxu0 0
      %908 = vmatpush1.bf16.msra.mxu0 %v715
      %909 = vmatprep.subr.bf16.mxu0 0
      %910 = vmatpush2.bf16.msra.mxu0 %v730
      %911 = vmatprep.subr.bf16.mxu0 0
      %912 = vmatpush2.bf16.msra.mxu0 %v729
      %913 = vmatprep.subr.bf16.mxu0 0
      %914 = vmatpush2.bf16.msra.mxu0 %v728
      %915 = vmatprep.subr.bf16.mxu0 0
      %916 = vmatpush2.bf16.msra.mxu0 %v727
      %917 = vmatprep.subr.bf16.mxu0 0
      %918 = vmatpush2.bf16.msra.mxu0 %v726
      %919 = vmatprep.subr.bf16.mxu0 0
      %920 = vmatpush2.bf16.msra.mxu0 %v725
      %921 = vmatprep.subr.bf16.mxu0 0
      %922 = vmatpush2.bf16.msra.mxu0 %v724
      %923 = vmatprep.subr.bf16.mxu0 0
      %924 = vmatpush2.bf16.msra.mxu0 %v723
      %925 = vmatprep.mubr.bf16.mxu0 %v416
      %926 = vmatmul.mubr.bf16.gmra.mxu0 %v415
      %v927 = vpop.f32.mrf.mxu0
      %v928 = vadd.f32 %v887, %v927
      %v929 = vpop.f32.mrf.mxu0
      %v930 = vpop.f32.mrf.mxu0
      %v931 = vadd.f32 %v890, %v930
      %v932 = vpop.f32.mrf.mxu0
      %933 = vdwg.mxu0
      %934 = vmatprep.subr.bf16.mxu0 0
      %935 = vmatpush1.bf16.msra.mxu0 %v738
      %936 = vmatprep.subr.bf16.mxu0 0
      %937 = vmatpush1.bf16.msra.mxu0 %v737
      %938 = vmatprep.subr.bf16.mxu0 0
      %939 = vmatpush1.bf16.msra.mxu0 %v736
      %940 = vmatprep.subr.bf16.mxu0 0
      %941 = vmatpush1.bf16.msra.mxu0 %v735
      %942 = vmatprep.subr.bf16.mxu0 0
      %943 = vmatpush1.bf16.msra.mxu0 %v734
      %944 = vmatprep.subr.bf16.mxu0 0
      %945 = vmatpush1.bf16.msra.mxu0 %v733
      %946 = vmatprep.subr.bf16.mxu0 0
      %947 = vmatpush1.bf16.msra.mxu0 %v732
      %948 = vmatprep.subr.bf16.mxu0 0
      %949 = vmatpush1.bf16.msra.mxu0 %v731
      %950 = vmatprep.subr.bf16.mxu0 0
      %951 = vmatpush2.bf16.msra.mxu0 %v746
      %952 = vmatprep.subr.bf16.mxu0 0
      %953 = vmatpush2.bf16.msra.mxu0 %v745
      %954 = vmatprep.subr.bf16.mxu0 0
      %955 = vmatpush2.bf16.msra.mxu0 %v744
      %956 = vmatprep.subr.bf16.mxu0 0
      %957 = vmatpush2.bf16.msra.mxu0 %v743
      %958 = vmatprep.subr.bf16.mxu0 0
      %959 = vmatpush2.bf16.msra.mxu0 %v742
      %960 = vmatprep.subr.bf16.mxu0 0
      %961 = vmatpush2.bf16.msra.mxu0 %v741
      %962 = vmatprep.subr.bf16.mxu0 0
      %963 = vmatpush2.bf16.msra.mxu0 %v740
      %964 = vmatprep.subr.bf16.mxu0 0
      %965 = vmatpush2.bf16.msra.mxu0 %v739
      %966 = vmatprep.mubr.bf16.mxu0 %v418
      %967 = vmatmul.mubr.bf16.gmra.mxu0 %v417
      %v968 = vpop.f32.mrf.mxu0
      %v969 = vadd.f32 %v928, %v968
      %v970 = vpop.f32.mrf.mxu0
      %v971 = vpop.f32.mrf.mxu0
      %v972 = vadd.f32 %v931, %v971
      %v973 = vpop.f32.mrf.mxu0
      %974 = vdwg.mxu0
      %vm975 = vcmask 64512
      %v976 = vsel %vm975, %v969, -inf
      %977 = vmax.xlane.f32.xlu0 %v976
      %v978 = vpop.xlane.xlu0 %977
      %v979 = vsel %vm975, %v972, -inf
      %980 = vmax.xlane.f32.xlu0 %v979
      %v981 = vpop.xlane.xlu0 %980
      %v982 = vmul.f32 %v978, 2.5
      %v983 = vmul.f32 %v981, 2.5
      %v984 = vld [vmem:[%s240] sm:$0xff]
      %v985 = vld [vmem:[%s240 + $0x8] sm:$0xff]
      %v986 = vadd.f32 %v982, %v984
      %v987 = vadd.f32 %v983, %v985
      %v988 = vxor.u32 %v986, 2147483648
      %v989 = vxor.u32 %v987, 2147483648
      %v990 = vmul.f32 %v988, 1.442695
      %v991 = vpow.pop %v990
      %v992 = vmul.f32 %v989, 1.442695
      %v993 = vpow.pop %v992
      %v994 = vadd.f32 %v991, 1.0
      %v995 = vadd.f32 %v993, 1.0
      %v996 = vrcp.pop %v994
      %v997 = vmul.f32 1.0, %v996
      %v998 = vrcp.pop %v995
      %v999 = vmul.f32 1.0, %v998
      %vm1000 = vcmask 7168
      %1001 = vst.msk [vmem:[%s246] sm:$0xff] %vm1000, %v997
      %1002 = vst.msk [vmem:[%s246 + $0x8] sm:$0xff] %vm1000, %v999
      %s1003 = smul.u32 2, %s15
      %p1004 = scmp.lt.s32.totalorder %s1003, 5
      %s1005 = scalar_select %p1004, %s1003, 5
      %s1006 = smul.addr %s1005, 8
      %s1007 = scalar_lea.vmem %s4, %s1006
      // Predicated region
      $region37: #{tpu_custom_call.1} parent=35 // pred_check
        %p1008 = pneg %p132
      $region38: #{tpu_custom_call.1} parent=35 // pred_check_branch
        %1010 = sbr.rel (%p1008) target = $region40
      $region39: #{tpu_custom_call.1} parent=35 // pred_region
        %s1011 = smul.u32 2, %s15
      $region40: #{tpu_custom_call.1} parent=35 // pred_fallthru
        _
    $region36: #{tpu_custom_call.1} parent=5 // pred_fallthru
      _
    %p1012 = scmp.le.s32.totalorder 2, %s10
    // Predicated region
    $region41: #{tpu_custom_call.1} parent=5 // pred_check
      %p1013 = pneg %p1012
    $region42: #{tpu_custom_call.1} parent=5 // pred_check_branch
      %1015 = sbr.rel (%p1013) target = $region44
    $region43: #{tpu_custom_call.1} parent=5 // pred_region
      %s1016 = ssub.s32 %s10, 2
      // Predicated region
      $region45: #{tpu_custom_call.1} parent=43 // pred_check
        %p1017 = pneg %p138
      $region46: #{tpu_custom_call.1} parent=43 // pred_check_branch
        %1019 = sbr.rel (%p1017) target = $region48
      $region47: #{tpu_custom_call.1} parent=43 // pred_region
        %s1020 = smul.u32 2, %s16
        %p1021 = scmp.lt.s32.totalorder %s1020, 5
        %s1022 = scalar_select %p1021, %s1020, 5
        %s1023 = smul.addr %s1022, 8
        %s1024 = scalar_lea.vmem %s4, %s1023
      $region48: #{tpu_custom_call.1} parent=43 // pred_fallthru
        _
    $region44: #{tpu_custom_call.1} parent=5 // pred_fallthru
      _
  $region6: #{tpu_custom_call.1} parent=0 // loop_footer
    %s14 = sadd.s32 1, %s10
  $region7: #{tpu_custom_call.1} parent=0 // loop_footer_branch
    %9 = sbr.rel target = $region3
  $region8: #{tpu_custom_call.1} parent=0 // loop_exit
    _

</llo_original>
